<compile_context>
chip_gen: v7x
topology: tpu7x:2x2x1
jax: 0.10.0
libtpu: 0.0.40
codegen_flags: <defaults>
</compile_context>

<pallas_src>
import functools

import jax
import jax.numpy as jnp
from jax.experimental import pallas as pl
from jax.experimental.pallas import tpu as pltpu


def _gelu_exact(x):
    # torch nn.GELU default (exact erf) — used only by the pure-JAX reference.
    return jax.nn.gelu(x, approximate=False)


def _elementwise_dtype():
    """bf16 elementwise on v6e/v7x (bf16 VPU/EUP); f32 on v5e and older."""
    try:
        kind = jax.devices()[0].device_kind.lower()
    except Exception:
        return jnp.float32
    return jnp.bfloat16 if ("v6" in kind or "v7" in kind) else jnp.float32


def _mlp_kernel(x_ref, w1_ref, b1_ref, w2_ref, b2_ref, w3_ref, b3_ref, o_ref,
                *, act_dtype):
    gelu = functools.partial(jax.nn.gelu, approximate=True)   # tanh form (EUP)

    x = x_ref[...]                                            # (tm, 1) f32
    # fc1: Linear(1 -> E) is an outer product -> pure VPU broadcast, no MXU.
    h1 = x * w1_ref[...] + b1_ref[...]                        # (tm, E) f32
    h1 = gelu(h1.astype(act_dtype)).astype(jnp.bfloat16)      # bf16 MXU operand

    # fc2: Linear(E -> H) on the MXU (bf16 operands, f32 accumulation).
    h2 = jnp.dot(h1, w2_ref[...], preferred_element_type=jnp.float32)
    h2 = h2 + b2_ref[...]                                     # (tm, H) f32
    h2 = gelu(h2.astype(act_dtype)).astype(jnp.bfloat16)

    # fc3: Linear(H -> E) on the MXU; output stays f32.
    y = jnp.dot(h2, w3_ref[...], preferred_element_type=jnp.float32)
    o_ref[...] = y + b3_ref[...]                              # (tm, E) f32


@functools.partial(jax.jit, static_argnames=("tm",))
def cls_encoder_mlp(x, w1, b1, w2, b2, w3, b3, *, tm=1024):
    """x: any shape of scalars -> output of shape x.shape + (E,).

    tm: row tile (grid step size), multiple of 128.  Sweep 1024-2048.
    """
    assert tm % 128 == 0, "row tile must be a multiple of the 128-lane vreg"
    orig_shape = x.shape
    E = w1.shape[0]            # fc1.weight: (E, 1)
    H = w2.shape[0]            # fc2.weight: (H, E)
    M = x.size

    # Clamp the tile for small inputs; prefer >= 2 grid steps so the single
    # "parallel" axis can be sharded across v7x's two TensorCores.
    m_min = ((M + 127) // 128) * 128
    tm_eff = min(tm, m_min)
    if m_min > 128 and m_min <= tm_eff:
        tm_eff = ((m_min // 2 + 127) // 128) * 128
    M_pad = ((M + tm_eff - 1) // tm_eff) * tm_eff

    # Rows as a column vector; padding rows compute gelu(bias) garbage that is
    # finite and sliced off below.
    x_col = jnp.pad(x.reshape(-1).astype(jnp.float32),
                    (0, M_pad - M)).reshape(M_pad, 1)

    act_dtype = _elementwise_dtype()

    # Weights pre-transposed to (in, out) so every dot is a plain A @ B.
    # fc2/fc3 weights are bf16 MXU operands (f32 accumulation); biases f32.
    w1k = w1.reshape(1, E).astype(jnp.float32)     # fc1.weight.T  (1, E)
    b1k = b1.reshape(1, E).astype(jnp.float32)
    w2k = w2.T.astype(jnp.bfloat16)                # fc2.weight.T  (E, H)
    b2k = b2.reshape(1, H).astype(jnp.float32)
    w3k = w3.T.astype(jnp.bfloat16)                # fc3.weight.T  (H, E)
    b3k = b3.reshape(1, E).astype(jnp.float32)

    grid = (M_pad // tm_eff,)
    inv = lambda i: (0, 0)     # grid-invariant blocks: fetched once, stay resident

    out = pl.pallas_call(
        functools.partial(_mlp_kernel, act_dtype=act_dtype),
        out_shape=jax.ShapeDtypeStruct((M_pad, E), jnp.float32),
        grid_spec=pltpu.PrefetchScalarGridSpec(
            num_scalar_prefetch=0,
            grid=grid,
            in_specs=[
                pl.BlockSpec((tm_eff, 1), lambda i: (i, 0)),   # x rows
                pl.BlockSpec((1, E), inv),                     # W1^T
                pl.BlockSpec((1, E), inv),                     # b1
                pl.BlockSpec((E, H), inv),                     # W2^T (bf16)
                pl.BlockSpec((1, H), inv),                     # b2
                pl.BlockSpec((H, E), inv),                     # W3^T (bf16)
                pl.BlockSpec((1, E), inv),                     # b3
            ],
            out_specs=pl.BlockSpec((tm_eff, E), lambda i: (i, 0)),
        ),
        compiler_params=pltpu.CompilerParams(
            dimension_semantics=("parallel",),
        ),
    )(x_col, w1k, b1k, w2k, b2k, w3k, b3k)

    # Output is already row-major (M_pad, E): slice padding, free reshape.
    return out[:M].reshape(orig_shape + (E,))


def init_params(key, embed_dim, forward_expansion):
    """Deterministic synthetic parameters in torch (out, in) layout."""
    E = embed_dim
    H = embed_dim * forward_expansion
    ks = jax.random.split(key, 6)
    w1 = jax.random.normal(ks[0], (E, 1), jnp.float32) * 0.5          # fc1.weight
    b1 = jax.random.normal(ks[1], (E,), jnp.float32) * 0.1
    w2 = jax.random.normal(ks[2], (H, E), jnp.float32) * (1.0 / E ** 0.5)
    b2 = jax.random.normal(ks[3], (H,), jnp.float32) * 0.1
    w3 = jax.random.normal(ks[4], (E, H), jnp.float32) * (1.0 / H ** 0.5)
    b3 = jax.random.normal(ks[5], (E,), jnp.float32) * 0.1
    return w1, b1, w2, b2, w3, b3


def reference_mlp(x, w1, b1, w2, b2, w3, b3):
    """Pure-JAX f32 reference of the torch forward (exact-erf GELU, p=0)."""
    xm = x[..., None].astype(jnp.float32)
    h1 = _gelu_exact(xm @ w1.T + b1)
    h2 = _gelu_exact(h1 @ w2.T + b2)
    return h2 @ w3.T + b3


if __name__ == "__main__":
    key = jax.random.PRNGKey(0)
    B, N = 2, 8               # x: (B, N) scalars, like a per-token class score
    embed_dim = 32
    forward_expansion = 4     # hidden = 128

    kx, kp = jax.random.split(key)
    x = jax.random.normal(kx, (B, N), jnp.float32)
    params = init_params(kp, embed_dim, forward_expansion)

    y = jax.block_until_ready(cls_encoder_mlp(x, *params))
    y_ref = reference_mlp(x, *params)

    assert y.shape == (B, N, embed_dim)
    # bf16 MXU operands (+ bf16 elementwise on v6e/v7x) and tanh-GELU vs the
    # exact-erf f32 reference -> bf16-level tolerance.
    assert jnp.allclose(y, y_ref, atol=3e-2, rtol=3e-2), "mismatch vs reference"

    print("KERNEL_OK")
</pallas_src>

<mosaic_0001>
module attributes {stable_mosaic.version = 11 : i64} {
  func.func @_mlp_kernel(%arg0: i32, %arg1: memref<128x1xf32, #tpu.memory_space<vmem>>, %arg2: memref<1x32xf32, #tpu.memory_space<vmem>>, %arg3: memref<1x32xf32, #tpu.memory_space<vmem>>, %arg4: memref<32x128xbf16, #tpu.memory_space<vmem>>, %arg5: memref<1x128xf32, #tpu.memory_space<vmem>>, %arg6: memref<128x32xbf16, #tpu.memory_space<vmem>>, %arg7: memref<1x32xf32, #tpu.memory_space<vmem>>, %arg8: memref<128x32xf32, #tpu.memory_space<vmem>>) attributes {dimension_semantics = [#tpu.dimension_semantics<parallel>], iteration_bounds = array<i64: 1>, scalar_prefetch = 0 : i64, scratch_operands = 0 : i64, tpu.core_type = #tpu.core_type<tc>, window_params = [{transform_indices = @transform_0, window_bounds = array<i64: 128, 1>}, {pipeline_mode = #tpu.pipeline_mode<synchronous>, transform_indices = @transform_1, window_bounds = array<i64: 1, 32>}, {pipeline_mode = #tpu.pipeline_mode<synchronous>, transform_indices = @transform_2, window_bounds = array<i64: 1, 32>}, {pipeline_mode = #tpu.pipeline_mode<synchronous>, transform_indices = @transform_3, window_bounds = array<i64: 32, 128>}, {pipeline_mode = #tpu.pipeline_mode<synchronous>, transform_indices = @transform_4, window_bounds = array<i64: 1, 128>}, {pipeline_mode = #tpu.pipeline_mode<synchronous>, transform_indices = @transform_5, window_bounds = array<i64: 128, 32>}, {pipeline_mode = #tpu.pipeline_mode<synchronous>, transform_indices = @transform_6, window_bounds = array<i64: 1, 32>}, {transform_indices = @transform_7, window_bounds = array<i64: 128, 32>}]} {
    %c0 = arith.constant 0 : index
    %c0_0 = arith.constant 0 : index
    %0 = vector.load %arg1[%c0, %c0_0] : memref<128x1xf32, #tpu.memory_space<vmem>>, vector<128x1xf32>
    %c0_1 = arith.constant 0 : index
    %c0_2 = arith.constant 0 : index
    %1 = vector.load %arg2[%c0_1, %c0_2] : memref<1x32xf32, #tpu.memory_space<vmem>>, vector<1x32xf32>
    %2 = vector.broadcast %0 : vector<128x1xf32> to vector<128x32xf32>
    %3 = vector.broadcast %1 : vector<1x32xf32> to vector<128x32xf32>
    %4 = arith.mulf %2, %3 : vector<128x32xf32>
    %c0_3 = arith.constant 0 : index
    %c0_4 = arith.constant 0 : index
    %5 = vector.load %arg3[%c0_3, %c0_4] : memref<1x32xf32, #tpu.memory_space<vmem>>, vector<1x32xf32>
    %6 = vector.broadcast %5 : vector<1x32xf32> to vector<128x32xf32>
    %7 = arith.addf %4, %6 : vector<128x32xf32>
    %8 = arith.mulf %7, %7 : vector<128x32xf32>
    %9 = arith.mulf %7, %8 : vector<128x32xf32>
    %cst = arith.constant 4.471500e-02 : f32
    %10 = vector.broadcast %cst : f32 to vector<128x32xf32>
    %11 = arith.mulf %10, %9 : vector<128x32xf32>
    %12 = arith.addf %7, %11 : vector<128x32xf32>
    %cst_5 = arith.constant 0.797884583 : f32
    %13 = vector.broadcast %cst_5 : f32 to vector<128x32xf32>
    %14 = arith.mulf %13, %12 : vector<128x32xf32>
    %15 = math.tanh %14 : vector<128x32xf32>
    %cst_6 = arith.constant 1.000000e+00 : f32
    %16 = vector.broadcast %cst_6 : f32 to vector<128x32xf32>
    %17 = arith.addf %16, %15 : vector<128x32xf32>
    %cst_7 = arith.constant 5.000000e-01 : f32
    %18 = vector.broadcast %cst_7 : f32 to vector<128x32xf32>
    %19 = arith.mulf %18, %17 : vector<128x32xf32>
    %20 = arith.mulf %7, %19 : vector<128x32xf32>
    %21 = arith.truncf %20 : vector<128x32xf32> to vector<128x32xbf16>
    %c0_8 = arith.constant 0 : index
    %c0_9 = arith.constant 0 : index
    %22 = vector.load %arg4[%c0_8, %c0_9] : memref<32x128xbf16, #tpu.memory_space<vmem>>, vector<32x128xbf16>
    %cst_10 = arith.constant dense<0.000000e+00> : vector<128x128xf32>
    %23 = tpu.matmul %21, %22, %cst_10 {dimension_numbers = #tpu.dot_dimension_numbers<[1], [0], [0], [1], [0, 0, 1, 1], [], []>} : vector<128x32xbf16>, vector<32x128xbf16>, vector<128x128xf32> -> vector<128x128xf32>
    %c0_11 = arith.constant 0 : index
    %c0_12 = arith.constant 0 : index
    %24 = vector.load %arg5[%c0_11, %c0_12] : memref<1x128xf32, #tpu.memory_space<vmem>>, vector<1x128xf32>
    %25 = vector.broadcast %24 : vector<1x128xf32> to vector<128x128xf32>
    %26 = arith.addf %23, %25 : vector<128x128xf32>
    %27 = arith.mulf %26, %26 : vector<128x128xf32>
    %28 = arith.mulf %26, %27 : vector<128x128xf32>
    %cst_13 = arith.constant 4.471500e-02 : f32
    %29 = vector.broadcast %cst_13 : f32 to vector<128x128xf32>
    %30 = arith.mulf %29, %28 : vector<128x128xf32>
    %31 = arith.addf %26, %30 : vector<128x128xf32>
    %cst_14 = arith.constant 0.797884583 : f32
    %32 = vector.broadcast %cst_14 : f32 to vector<128x128xf32>
    %33 = arith.mulf %32, %31 : vector<128x128xf32>
    %34 = math.tanh %33 : vector<128x128xf32>
    %cst_15 = arith.constant 1.000000e+00 : f32
    %35 = vector.broadcast %cst_15 : f32 to vector<128x128xf32>
    %36 = arith.addf %35, %34 : vector<128x128xf32>
    %cst_16 = arith.constant 5.000000e-01 : f32
    %37 = vector.broadcast %cst_16 : f32 to vector<128x128xf32>
    %38 = arith.mulf %37, %36 : vector<128x128xf32>
    %39 = arith.mulf %26, %38 : vector<128x128xf32>
    %40 = arith.truncf %39 : vector<128x128xf32> to vector<128x128xbf16>
    %c0_17 = arith.constant 0 : index
    %c0_18 = arith.constant 0 : index
    %41 = vector.load %arg6[%c0_17, %c0_18] : memref<128x32xbf16, #tpu.memory_space<vmem>>, vector<128x32xbf16>
    %cst_19 = arith.constant dense<0.000000e+00> : vector<128x32xf32>
    %42 = tpu.matmul %40, %41, %cst_19 {dimension_numbers = #tpu.dot_dimension_numbers<[1], [0], [0], [1], [0, 0, 1, 1], [], []>} : vector<128x128xbf16>, vector<128x32xbf16>, vector<128x32xf32> -> vector<128x32xf32>
    %c0_20 = arith.constant 0 : index
    %c0_21 = arith.constant 0 : index
    %43 = vector.load %arg7[%c0_20, %c0_21] : memref<1x32xf32, #tpu.memory_space<vmem>>, vector<1x32xf32>
    %44 = vector.broadcast %43 : vector<1x32xf32> to vector<128x32xf32>
    %45 = arith.addf %42, %44 : vector<128x32xf32>
    %c0_22 = arith.constant 0 : index
    %c0_23 = arith.constant 0 : index
    %46 = vector.load %arg8[%c0_22, %c0_23] : memref<128x32xf32, #tpu.memory_space<vmem>>, vector<128x32xf32>
    tpu.vector_store %arg8[%c0_22, %c0_23], %45 {strides = array<i32>} : memref<128x32xf32, #tpu.memory_space<vmem>>, vector<128x32xf32>,
    return
  }
  func.func @transform_0(%arg0: i32) -> (i32, i32) {
    %c0_i32 = arith.constant 0 : i32
    %c0_i32_0 = arith.constant 0 : i32
    return %arg0, %c0_i32 : i32, i32
  }
  func.func @transform_1(%arg0: i32) -> (i32, i32) {
    %c0_i32 = arith.constant 0 : i32
    %c0_i32_0 = arith.constant 0 : i32
    %c0_i32_1 = arith.constant 0 : i32
    return %c0_i32, %c0_i32_0 : i32, i32
  }
  func.func @transform_2(%arg0: i32) -> (i32, i32) {
    %c0_i32 = arith.constant 0 : i32
    %c0_i32_0 = arith.constant 0 : i32
    %c0_i32_1 = arith.constant 0 : i32
    return %c0_i32, %c0_i32_0 : i32, i32
  }
  func.func @transform_3(%arg0: i32) -> (i32, i32) {
    %c0_i32 = arith.constant 0 : i32
    %c0_i32_0 = arith.constant 0 : i32
    %c0_i32_1 = arith.constant 0 : i32
    return %c0_i32, %c0_i32_0 : i32, i32
  }
  func.func @transform_4(%arg0: i32) -> (i32, i32) {
    %c0_i32 = arith.constant 0 : i32
    %c0_i32_0 = arith.constant 0 : i32
    %c0_i32_1 = arith.constant 0 : i32
    return %c0_i32, %c0_i32_0 : i32, i32
  }
  func.func @transform_5(%arg0: i32) -> (i32, i32) {
    %c0_i32 = arith.constant 0 : i32
    %c0_i32_0 = arith.constant 0 : i32
    %c0_i32_1 = arith.constant 0 : i32
    return %c0_i32, %c0_i32_0 : i32, i32
  }
  func.func @transform_6(%arg0: i32) -> (i32, i32) {
    %c0_i32 = arith.constant 0 : i32
    %c0_i32_0 = arith.constant 0 : i32
    %c0_i32_1 = arith.constant 0 : i32
    return %c0_i32, %c0_i32_0 : i32, i32
  }
  func.func @transform_7(%arg0: i32) -> (i32, i32) {
    %c0_i32 = arith.constant 0 : i32
    %c0_i32_0 = arith.constant 0 : i32
    return %arg0, %c0_i32 : i32, i32
  }
}

</mosaic_0001>

<llo_original>
// kernel: cls_encoder_mlp.1
$region0: #{cls_encoder_mlp.1}
  #allocation0 [shape = 'u32[]', space=smem, size = 0x4, offset = 0x4, fixed_abs, tag = 'smem constant byte address 0x4 - core index']
  #allocation1 [shape = 'u32[144,128]{1,0:T(1,128)}', space=vmem, size = 0x12000, scoped, tag = 'internal scratch']
  %s0 = inlined_call_operand.vmem [shape: f32[128,1], index: 0, kind: input, shape index: {}]
  %s1 = inlined_call_operand.vmem [shape: f32[1,32], index: 1, kind: input, shape index: {}]
  %s2 = inlined_call_operand.vmem [shape: f32[1,32], index: 2, kind: input, shape index: {}]
  %s3 = inlined_call_operand.vmem [shape: bf16[32,128], index: 3, kind: input, shape index: {}]
  %s4 = inlined_call_operand.vmem [shape: f32[1,128], index: 4, kind: input, shape index: {}]
  %s5 = inlined_call_operand.vmem [shape: bf16[128,32], index: 5, kind: input, shape index: {}]
  %s6 = inlined_call_operand.vmem [shape: f32[1,32], index: 6, kind: input, shape index: {}]
  %s7 = inlined_call_operand.vmem [shape: f32[128,32], index: 7, kind: output, shape index: {}]
  %s8 = sld [smem:[#allocation0]]
  $region38: #{cls_encoder_mlp.1} parent=0
    _
  %s10 = ssub.s32 1, %s8
  %s11 = scalar_select 0, %s10, %s8
  // Predicated region
  $region2: #{cls_encoder_mlp.1} parent=0 // pred_check
    _
  $region3: #{cls_encoder_mlp.1} parent=0 // pred_check_branch
    %13 = sbr.rel (0) target = $region5
  $region4: #{cls_encoder_mlp.1} parent=0 // pred_region
    _
  $region5: #{cls_encoder_mlp.1} parent=0 // pred_fallthru
    _
  // Predicated region
  $region6: #{cls_encoder_mlp.1} parent=0 // pred_check
    _
  $region7: #{cls_encoder_mlp.1} parent=0 // pred_check_branch
    %15 = sbr.rel (0) target = $region9
  $region8: #{cls_encoder_mlp.1} parent=0 // pred_region
    _
  $region9: #{cls_encoder_mlp.1} parent=0 // pred_fallthru
    _
  // Predicated region
  $region10: #{cls_encoder_mlp.1} parent=0 // pred_check
    _
  $region11: #{cls_encoder_mlp.1} parent=0 // pred_check_branch
    %17 = sbr.rel (0) target = $region13
  $region12: #{cls_encoder_mlp.1} parent=0 // pred_region
    _
  $region13: #{cls_encoder_mlp.1} parent=0 // pred_fallthru
    _
  // Predicated region
  $region14: #{cls_encoder_mlp.1} parent=0 // pred_check
    _
  $region15: #{cls_encoder_mlp.1} parent=0 // pred_check_branch
    %19 = sbr.rel (0) target = $region17
  $region16: #{cls_encoder_mlp.1} parent=0 // pred_region
    _
  $region17: #{cls_encoder_mlp.1} parent=0 // pred_fallthru
    _
  // Predicated region
  $region18: #{cls_encoder_mlp.1} parent=0 // pred_check
    _
  $region19: #{cls_encoder_mlp.1} parent=0 // pred_check_branch
    %21 = sbr.rel (0) target = $region21
  $region20: #{cls_encoder_mlp.1} parent=0 // pred_region
    _
  $region21: #{cls_encoder_mlp.1} parent=0 // pred_fallthru
    _
  // Predicated region
  $region22: #{cls_encoder_mlp.1} parent=0 // pred_check
    _
  $region23: #{cls_encoder_mlp.1} parent=0 // pred_check_branch
    %23 = sbr.rel (0) target = $region25
  $region24: #{cls_encoder_mlp.1} parent=0 // pred_region
    _
  $region25: #{cls_encoder_mlp.1} parent=0 // pred_fallthru
    _
  // Predicated region
  $region26: #{cls_encoder_mlp.1} parent=0 // pred_check
    _
  $region27: #{cls_encoder_mlp.1} parent=0 // pred_check_branch
    %25 = sbr.rel (0) target = $region29
  $region28: #{cls_encoder_mlp.1} parent=0 // pred_region
    _
  $region29: #{cls_encoder_mlp.1} parent=0 // pred_fallthru
    _
  %v27 = vld [vmem:[%s0] sm:$0xff]
  %v28 = vld [vmem:[%s0 + $0x8] sm:$0xff]
  %v29 = vld [vmem:[%s0 + $0x10] sm:$0xff]
  %v30 = vld [vmem:[%s0 + $0x18] sm:$0xff]
  %v31 = vld [vmem:[%s0 + $0x20] sm:$0xff]
  %v32 = vld [vmem:[%s0 + $0x28] sm:$0xff]
  %v33 = vld [vmem:[%s0 + $0x30] sm:$0xff]
  %v34 = vld [vmem:[%s0 + $0x38] sm:$0xff]
  %v35 = vld [vmem:[%s0 + $0x40] sm:$0xff]
  %v36 = vld [vmem:[%s0 + $0x48] sm:$0xff]
  %v37 = vld [vmem:[%s0 + $0x50] sm:$0xff]
  %v38 = vld [vmem:[%s0 + $0x58] sm:$0xff]
  %v39 = vld [vmem:[%s0 + $0x60] sm:$0xff]
  %v40 = vld [vmem:[%s0 + $0x68] sm:$0xff]
  %v41 = vld [vmem:[%s0 + $0x70] sm:$0xff]
  %v42 = vld [vmem:[%s0 + $0x78] sm:$0xff]
  %v43 = vld [vmem:[%s1] sm:$0x1]
  %45 = vset.pattern.permute.xlu0 0
  %46 = vperm.xlu0 %45, %v27
  %v47 = vpop.permute.xlu0 %46
  %50 = vset.pattern.permute.xlu0 0
  %51 = vperm.xlu0 %50, %v28
  %v52 = vpop.permute.xlu0 %51
  %55 = vset.pattern.permute.xlu0 0
  %56 = vperm.xlu0 %55, %v29
  %v57 = vpop.permute.xlu0 %56
  %60 = vset.pattern.permute.xlu0 0
  %61 = vperm.xlu0 %60, %v30
  %v62 = vpop.permute.xlu0 %61
  %65 = vset.pattern.permute.xlu0 0
  %66 = vperm.xlu0 %65, %v31
  %v67 = vpop.permute.xlu0 %66
  %70 = vset.pattern.permute.xlu0 0
  %71 = vperm.xlu0 %70, %v32
  %v72 = vpop.permute.xlu0 %71
  %75 = vset.pattern.permute.xlu0 0
  %76 = vperm.xlu0 %75, %v33
  %v77 = vpop.permute.xlu0 %76
  %80 = vset.pattern.permute.xlu0 0
  %81 = vperm.xlu0 %80, %v34
  %v82 = vpop.permute.xlu0 %81
  %85 = vset.pattern.permute.xlu0 0
  %86 = vperm.xlu0 %85, %v35
  %v87 = vpop.permute.xlu0 %86
  %90 = vset.pattern.permute.xlu0 0
  %91 = vperm.xlu0 %90, %v36
  %v92 = vpop.permute.xlu0 %91
  %95 = vset.pattern.permute.xlu0 0
  %96 = vperm.xlu0 %95, %v37
  %v97 = vpop.permute.xlu0 %96
  %100 = vset.pattern.permute.xlu0 0
  %101 = vperm.xlu0 %100, %v38
  %v102 = vpop.permute.xlu0 %101
  %105 = vset.pattern.permute.xlu0 0
  %106 = vperm.xlu0 %105, %v39
  %v107 = vpop.permute.xlu0 %106
  %110 = vset.pattern.permute.xlu0 0
  %111 = vperm.xlu0 %110, %v40
  %v112 = vpop.permute.xlu0 %111
  %115 = vset.pattern.permute.xlu0 0
  %116 = vperm.xlu0 %115, %v41
  %v117 = vpop.permute.xlu0 %116
  %120 = vset.pattern.permute.xlu0 0
  %121 = vperm.xlu0 %120, %v42
  %v122 = vpop.permute.xlu0 %121
  %v125 = vlaneseq
  %v126 = vshrl.u32 %v125, 7
  %v127 = vsub.s32 0, %v126
  %v128 = vrot.slane %v43, %v127
  %v130 = vmul.f32 %v47, %v128
  %v131 = vmul.f32 %v52, %v128
  %v132 = vmul.f32 %v57, %v128
  %v133 = vmul.f32 %v62, %v128
  %v134 = vmul.f32 %v67, %v128
  %v135 = vmul.f32 %v72, %v128
  %v136 = vmul.f32 %v77, %v128
  %v137 = vmul.f32 %v82, %v128
  %v138 = vmul.f32 %v87, %v128
  %v139 = vmul.f32 %v92, %v128
  %v140 = vmul.f32 %v97, %v128
  %v141 = vmul.f32 %v102, %v128
  %v142 = vmul.f32 %v107, %v128
  %v143 = vmul.f32 %v112, %v128
  %v144 = vmul.f32 %v117, %v128
  %v145 = vmul.f32 %v122, %v128
  %v146 = vld [vmem:[%s2] sm:$0x1]
  %v148 = vlaneseq
  %v149 = vshrl.u32 %v148, 7
  %v150 = vsub.s32 0, %v149
  %v151 = vrot.slane %v146, %v150
  %v153 = vadd.f32 %v130, %v151
  %v154 = vadd.f32 %v131, %v151
  %v155 = vadd.f32 %v132, %v151
  %v156 = vadd.f32 %v133, %v151
  %v157 = vadd.f32 %v134, %v151
  %v158 = vadd.f32 %v135, %v151
  %v159 = vadd.f32 %v136, %v151
  %v160 = vadd.f32 %v137, %v151
  %v161 = vadd.f32 %v138, %v151
  %v162 = vadd.f32 %v139, %v151
  %v163 = vadd.f32 %v140, %v151
  %v164 = vadd.f32 %v141, %v151
  %v165 = vadd.f32 %v142, %v151
  %v166 = vadd.f32 %v143, %v151
  %v167 = vadd.f32 %v144, %v151
  %v168 = vadd.f32 %v145, %v151
  %v169 = vmul.f32 %v153, %v153
  %v170 = vmul.f32 %v154, %v154
  %v171 = vmul.f32 %v155, %v155
  %v172 = vmul.f32 %v156, %v156
  %v173 = vmul.f32 %v157, %v157
  %v174 = vmul.f32 %v158, %v158
  %v175 = vmul.f32 %v159, %v159
  %v176 = vmul.f32 %v160, %v160
  %v177 = vmul.f32 %v161, %v161
  %v178 = vmul.f32 %v162, %v162
  %v179 = vmul.f32 %v163, %v163
  %v180 = vmul.f32 %v164, %v164
  %v181 = vmul.f32 %v165, %v165
  %v182 = vmul.f32 %v166, %v166
  %v183 = vmul.f32 %v167, %v167
  %v184 = vmul.f32 %v168, %v168
  %v185 = vmul.f32 %v153, %v169
  %v186 = vmul.f32 %v154, %v170
  %v187 = vmul.f32 %v155, %v171
  %v188 = vmul.f32 %v156, %v172
  %v189 = vmul.f32 %v157, %v173
  %v190 = vmul.f32 %v158, %v174
  %v191 = vmul.f32 %v159, %v175
  %v192 = vmul.f32 %v160, %v176
  %v193 = vmul.f32 %v161, %v177
  %v194 = vmul.f32 %v162, %v178
  %v195 = vmul.f32 %v163, %v179
  %v196 = vmul.f32 %v164, %v180
  %v197 = vmul.f32 %v165, %v181
  %v198 = vmul.f32 %v166, %v182
  %v199 = vmul.f32 %v167, %v183
  %v200 = vmul.f32 %v168, %v184
  %v201 = vmul.f32 %v185, 0.044715
  %v202 = vmul.f32 %v186, 0.044715
  %v203 = vmul.f32 %v187, 0.044715
  %v204 = vmul.f32 %v188, 0.044715
  %v205 = vmul.f32 %v189, 0.044715
  %v206 = vmul.f32 %v190, 0.044715
  %v207 = vmul.f32 %v191, 0.044715
  %v208 = vmul.f32 %v192, 0.044715
  %v209 = vmul.f32 %v193, 0.044715
  %v210 = vmul.f32 %v194, 0.044715
  %v211 = vmul.f32 %v195, 0.044715
  %v212 = vmul.f32 %v196, 0.044715
  %v213 = vmul.f32 %v197, 0.044715
  %v214 = vmul.f32 %v198, 0.044715
  %v215 = vmul.f32 %v199, 0.044715
  %v216 = vmul.f32 %v200, 0.044715
  %v217 = vadd.f32 %v153, %v201
  %v218 = vadd.f32 %v154, %v202
  %v219 = vadd.f32 %v155, %v203
  %v220 = vadd.f32 %v156, %v204
  %v221 = vadd.f32 %v157, %v205
  %v222 = vadd.f32 %v158, %v206
  %v223 = vadd.f32 %v159, %v207
  %v224 = vadd.f32 %v160, %v208
  %v225 = vadd.f32 %v161, %v209
  %v226 = vadd.f32 %v162, %v210
  %v227 = vadd.f32 %v163, %v211
  %v228 = vadd.f32 %v164, %v212
  %v229 = vadd.f32 %v165, %v213
  %v230 = vadd.f32 %v166, %v214
  %v231 = vadd.f32 %v167, %v215
  %v232 = vadd.f32 %v168, %v216
  %v233 = vmul.f32 %v217, 0.7978846
  %v234 = vmul.f32 %v218, 0.7978846
  %v235 = vmul.f32 %v219, 0.7978846
  %v236 = vmul.f32 %v220, 0.7978846
  %v237 = vmul.f32 %v221, 0.7978846
  %v238 = vmul.f32 %v222, 0.7978846
  %v239 = vmul.f32 %v223, 0.7978846
  %v240 = vmul.f32 %v224, 0.7978846
  %v241 = vmul.f32 %v225, 0.7978846
  %v242 = vmul.f32 %v226, 0.7978846
  %v243 = vmul.f32 %v227, 0.7978846
  %v244 = vmul.f32 %v228, 0.7978846
  %v245 = vmul.f32 %v229, 0.7978846
  %v246 = vmul.f32 %v230, 0.7978846
  %v247 = vmul.f32 %v231, 0.7978846
  %v248 = vmul.f32 %v232, 0.7978846
  %v249 = vtanh.pop %v233
  %v250 = vtanh.pop %v234
  %v251 = vtanh.pop %v235
  %v252 = vtanh.pop %v236
  %v253 = vtanh.pop %v237
  %v254 = vtanh.pop %v238
  %v255 = vtanh.pop %v239
  %v256 = vtanh.pop %v240
  %v257 = vtanh.pop %v241
  %v258 = vtanh.pop %v242
  %v259 = vtanh.pop %v243
  %v260 = vtanh.pop %v244
  %v261 = vtanh.pop %v245
  %v262 = vtanh.pop %v246
  %v263 = vtanh.pop %v247
  %v264 = vtanh.pop %v248
  %v265 = vadd.f32 %v249, 1.0
  %v266 = vadd.f32 %v250, 1.0
  %v267 = vadd.f32 %v251, 1.0
  %v268 = vadd.f32 %v252, 1.0
  %v269 = vadd.f32 %v253, 1.0
  %v270 = vadd.f32 %v254, 1.0
  %v271 = vadd.f32 %v255, 1.0
  %v272 = vadd.f32 %v256, 1.0
  %v273 = vadd.f32 %v257, 1.0
  %v274 = vadd.f32 %v258, 1.0
  %v275 = vadd.f32 %v259, 1.0
  %v276 = vadd.f32 %v260, 1.0
  %v277 = vadd.f32 %v261, 1.0
  %v278 = vadd.f32 %v262, 1.0
  %v279 = vadd.f32 %v263, 1.0
  %v280 = vadd.f32 %v264, 1.0
  %v281 = vmul.f32 %v265, 0.5
  %v282 = vmul.f32 %v266, 0.5
  %v283 = vmul.f32 %v267, 0.5
  %v284 = vmul.f32 %v268, 0.5
  %v285 = vmul.f32 %v269, 0.5
  %v286 = vmul.f32 %v270, 0.5
  %v287 = vmul.f32 %v271, 0.5
  %v288 = vmul.f32 %v272, 0.5
  %v289 = vmul.f32 %v273, 0.5
  %v290 = vmul.f32 %v274, 0.5
  %v291 = vmul.f32 %v275, 0.5
  %v292 = vmul.f32 %v276, 0.5
  %v293 = vmul.f32 %v277, 0.5
  %v294 = vmul.f32 %v278, 0.5
  %v295 = vmul.f32 %v279, 0.5
  %v296 = vmul.f32 %v280, 0.5
  %v297 = vmul.f32 %v153, %v281
  %v298 = vmul.f32 %v154, %v282
  %v299 = vmul.f32 %v155, %v283
  %v300 = vmul.f32 %v156, %v284
  %v301 = vmul.f32 %v157, %v285
  %v302 = vmul.f32 %v158, %v286
  %v303 = vmul.f32 %v159, %v287
  %v304 = vmul.f32 %v160, %v288
  %v305 = vmul.f32 %v161, %v289
  %v306 = vmul.f32 %v162, %v290
  %v307 = vmul.f32 %v163, %v291
  %v308 = vmul.f32 %v164, %v292
  %v309 = vmul.f32 %v165, %v293
  %v310 = vmul.f32 %v166, %v294
  %v311 = vmul.f32 %v167, %v295
  %v312 = vmul.f32 %v168, %v296
  %v313 = vpack.c.bf16 %v298, %v297
  %v314 = vpack.c.bf16 %v300, %v299
  %v315 = vpack.c.bf16 %v302, %v301
  %v316 = vpack.c.bf16 %v304, %v303
  %v317 = vpack.c.bf16 %v306, %v305
  %v318 = vpack.c.bf16 %v308, %v307
  %v319 = vpack.c.bf16 %v310, %v309
  %v320 = vpack.c.bf16 %v312, %v311
  %v321 = vld [vmem:[%s3] sm:$0xf]
  %v322 = vld [vmem:[%s3 + $0x4] sm:$0xf]
  %v323 = vld [vmem:[%s3 + $0x8] sm:$0xf]
  %v324 = vld [vmem:[%s3 + $0xc] sm:$0xf]
  %v325 = vld [vmem:[%s4] sm:$0x1]
  %v327 = vlaneseq
  %v328 = vshrl.u32 %v327, 7
  %v329 = vsub.s32 0, %v328
  %v330 = vrot.slane %v325, %v329
  %v336 = vunpack.c.l.b16 %v321
  %v337 = vunpack.c.l.b16 %v322
  %v338 = vunpack.c.l.b16 %v323
  %v339 = vunpack.c.l.b16 %v324
  %v340 = vpack.c.b16 %v337, %v336
  %v341 = vpack.c.b16 %v339, %v338
  %vm344 = vcmask 261120
  %v346 = vsel %vm344, %v313, 0
  %v349 = vsel %vm344, %v314, 0
  %v352 = vsel %vm344, %v315, 0
  %v355 = vsel %vm344, %v316, 0
  %v358 = vsel %vm344, %v317, 0
  %v361 = vsel %vm344, %v318, 0
  %v364 = vsel %vm344, %v319, 0
  %v367 = vsel %vm344, %v320, 0
  %369 = vmatprep.subr.bf16.mxu0 0
  %370 = vmatpush1.bf16.msra.mxu0 %v340
  %371 = vmatprep.subr.bf16.mxu0 0
  %372 = vmatpush1.bf16.msra.mxu0 %v341
  %373 = vmatprep.subr.bf16.mxu0 0
  %374 = vmatpush1.bf16.msra.mxu0 0
  %375 = vmatprep.subr.bf16.mxu0 0
  %376 = vmatpush1.bf16.msra.mxu0 0
  %377 = vmatprep.subr.bf16.mxu0 0
  %378 = vmatpush1.bf16.msra.mxu0 0
  %379 = vmatprep.subr.bf16.mxu0 0
  %380 = vmatpush1.bf16.msra.mxu0 0
  %381 = vmatprep.subr.bf16.mxu0 0
  %382 = vmatpush1.bf16.msra.mxu0 0
  %383 = vmatprep.subr.bf16.mxu0 0
  %384 = vmatpush1.bf16.msra.mxu0 0
  %385 = vmatprep.subr.bf16.mxu0 0
  %386 = vmatpush1.bf16.msra.mxu0 0
  %387 = vmatprep.subr.bf16.mxu0 0
  %388 = vmatpush1.bf16.msra.mxu0 0
  %389 = vmatprep.subr.bf16.mxu0 0
  %390 = vmatpush1.bf16.msra.mxu0 0
  %391 = vmatprep.subr.bf16.mxu0 0
  %392 = vmatpush1.bf16.msra.mxu0 0
  %393 = vmatprep.subr.bf16.mxu0 0
  %394 = vmatpush1.bf16.msra.mxu0 0
  %395 = vmatprep.subr.bf16.mxu0 0
  %396 = vmatpush1.bf16.msra.mxu0 0
  %397 = vmatprep.subr.bf16.mxu0 0
  %398 = vmatpush1.bf16.msra.mxu0 0
  %399 = vmatprep.subr.bf16.mxu0 0
  %400 = vmatpush1.bf16.msra.mxu0 0
  %401 = vmatprep.mubr.bf16.mxu0 0
  %402 = vmatmul.mubr.bf16.gmra.mrb[0].mxu0 %v346
  %v403 = vpop.f32.mrb[0].mxu0
  %v404 = vadd.f32 %v330, %v403
  %v405 = vpop.f32.mrb[0].mxu0
  %v406 = vpop.f32.mrb[0].mxu0
  %v407 = vadd.f32 %v330, %v406
  %v408 = vpop.f32.mrb[0].mxu0
  %409 = vmatprep.mubr.bf16.mxu0 0
  %410 = vmatmul.mubr.bf16.gmra.mrb[0].mxu0 %v349
  %v411 = vpop.f32.mrb[0].mxu0
  %v412 = vadd.f32 %v330, %v411
  %v413 = vpop.f32.mrb[0].mxu0
  %v414 = vpop.f32.mrb[0].mxu0
  %v415 = vadd.f32 %v330, %v414
  %v416 = vpop.f32.mrb[0].mxu0
  %417 = vmatprep.mubr.bf16.mxu0 0
  %418 = vmatmul.mubr.bf16.gmra.mrb[0].mxu0 %v352
  %v419 = vpop.f32.mrb[0].mxu0
  %v420 = vadd.f32 %v330, %v419
  %v421 = vpop.f32.mrb[0].mxu0
  %v422 = vpop.f32.mrb[0].mxu0
  %v423 = vadd.f32 %v330, %v422
  %v424 = vpop.f32.mrb[0].mxu0
  %425 = vmatprep.mubr.bf16.mxu0 0
  %426 = vmatmul.mubr.bf16.gmra.mrb[0].mxu0 %v355
  %v427 = vpop.f32.mrb[0].mxu0
  %v428 = vadd.f32 %v330, %v427
  %v429 = vpop.f32.mrb[0].mxu0
  %v430 = vpop.f32.mrb[0].mxu0
  %v431 = vadd.f32 %v330, %v430
  %v432 = vpop.f32.mrb[0].mxu0
  %433 = vmatprep.mubr.bf16.mxu0 0
  %434 = vmatmul.mubr.bf16.gmra.mrb[0].mxu0 %v358
  %v435 = vpop.f32.mrb[0].mxu0
  %v436 = vadd.f32 %v330, %v435
  %v437 = vpop.f32.mrb[0].mxu0
  %v438 = vpop.f32.mrb[0].mxu0
  %v439 = vadd.f32 %v330, %v438
  %v440 = vpop.f32.mrb[0].mxu0
  %441 = vmatprep.mubr.bf16.mxu0 0
  %442 = vmatmul.mubr.bf16.gmra.mrb[0].mxu0 %v361
  %v443 = vpop.f32.mrb[0].mxu0
  %v444 = vadd.f32 %v330, %v443
  %v445 = vpop.f32.mrb[0].mxu0
  %v446 = vpop.f32.mrb[0].mxu0
  %v447 = vadd.f32 %v330, %v446
  %v448 = vpop.f32.mrb[0].mxu0
  %449 = vmatprep.mubr.bf16.mxu0 0
  %450 = vmatmul.mubr.bf16.gmra.mrb[0].mxu0 %v364
  %v451 = vpop.f32.mrb[0].mxu0
  %v452 = vadd.f32 %v330, %v451
  %v453 = vpop.f32.mrb[0].mxu0
  %v454 = vpop.f32.mrb[0].mxu0
  %v455 = vadd.f32 %v330, %v454
  %v456 = vpop.f32.mrb[0].mxu0
  %457 = vmatprep.mubr.bf16.mxu0 0
  %458 = vmatmul.mubr.bf16.gmra.mrb[0].mxu0 %v367
  %v459 = vpop.f32.mrb[0].mxu0
  %v460 = vadd.f32 %v330, %v459
  %v461 = vpop.f32.mrb[0].mxu0
  %v462 = vpop.f32.mrb[0].mxu0
  %v463 = vadd.f32 %v330, %v462
  %v464 = vpop.f32.mrb[0].mxu0
  %465 = vdwg.mxu0
  %v466 = vmul.f32 %v404, %v404
  %v467 = vmul.f32 %v407, %v407
  %v468 = vmul.f32 %v412, %v412
  %v469 = vmul.f32 %v415, %v415
  %v470 = vmul.f32 %v420, %v420
  %v471 = vmul.f32 %v423, %v423
  %v472 = vmul.f32 %v428, %v428
  %v473 = vmul.f32 %v431, %v431
  %v474 = vmul.f32 %v436, %v436
  %v475 = vmul.f32 %v439, %v439
  %v476 = vmul.f32 %v444, %v444
  %v477 = vmul.f32 %v447, %v447
  %v478 = vmul.f32 %v452, %v452
  %v479 = vmul.f32 %v455, %v455
  %v480 = vmul.f32 %v460, %v460
  %v481 = vmul.f32 %v463, %v463
  %v482 = vmul.f32 %v404, %v466
  %v483 = vmul.f32 %v407, %v467
  %v484 = vmul.f32 %v412, %v468
  %v485 = vmul.f32 %v415, %v469
  %v486 = vmul.f32 %v420, %v470
  %v487 = vmul.f32 %v423, %v471
  %v488 = vmul.f32 %v428, %v472
  %v489 = vmul.f32 %v431, %v473
  %v490 = vmul.f32 %v436, %v474
  %v491 = vmul.f32 %v439, %v475
  %v492 = vmul.f32 %v444, %v476
  %v493 = vmul.f32 %v447, %v477
  %v494 = vmul.f32 %v452, %v478
  %v495 = vmul.f32 %v455, %v479
  %v496 = vmul.f32 %v460, %v480
  %v497 = vmul.f32 %v463, %v481
  %v498 = vmul.f32 %v482, 0.044715
  %v499 = vmul.f32 %v483, 0.044715
  %v500 = vmul.f32 %v484, 0.044715
  %v501 = vmul.f32 %v485, 0.044715
  %v502 = vmul.f32 %v486, 0.044715
  %v503 = vmul.f32 %v487, 0.044715
  %v504 = vmul.f32 %v488, 0.044715
  %v505 = vmul.f32 %v489, 0.044715
  %v506 = vmul.f32 %v490, 0.044715
  %v507 = vmul.f32 %v491, 0.044715
  %v508 = vmul.f32 %v492, 0.044715
  %v509 = vmul.f32 %v493, 0.044715
  %v510 = vmul.f32 %v494, 0.044715
  %v511 = vmul.f32 %v495, 0.044715
  %v512 = vmul.f32 %v496, 0.044715
  %v513 = vmul.f32 %v497, 0.044715
  %v514 = vadd.f32 %v404, %v498
  %v515 = vadd.f32 %v407, %v499
  %v516 = vadd.f32 %v412, %v500
  %v517 = vadd.f32 %v415, %v501
  %v518 = vadd.f32 %v420, %v502
  %v519 = vadd.f32 %v423, %v503
  %v520 = vadd.f32 %v428, %v504
  %v521 = vadd.f32 %v431, %v505
  %v522 = vadd.f32 %v436, %v506
  %v523 = vadd.f32 %v439, %v507
  %v524 = vadd.f32 %v444, %v508
  %v525 = vadd.f32 %v447, %v509
  %v526 = vadd.f32 %v452, %v510
  %v527 = vadd.f32 %v455, %v511
  %v528 = vadd.f32 %v460, %v512
  %v529 = vadd.f32 %v463, %v513
  %v530 = vmul.f32 %v514, 0.7978846
  %v531 = vmul.f32 %v515, 0.7978846
  %v532 = vmul.f32 %v516, 0.7978846
  %v533 = vmul.f32 %v517, 0.7978846
  %v534 = vmul.f32 %v518, 0.7978846
  %v535 = vmul.f32 %v519, 0.7978846
  %v536 = vmul.f32 %v520, 0.7978846
  %v537 = vmul.f32 %v521, 0.7978846
  %v538 = vmul.f32 %v522, 0.7978846
  %v539 = vmul.f32 %v523, 0.7978846
  %v540 = vmul.f32 %v524, 0.7978846
  %v541 = vmul.f32 %v525, 0.7978846
  %v542 = vmul.f32 %v526, 0.7978846
  %v543 = vmul.f32 %v527, 0.7978846
  %v544 = vmul.f32 %v528, 0.7978846
  %v545 = vmul.f32 %v529, 0.7978846
  %v546 = vtanh.pop %v530
  %v547 = vtanh.pop %v531
  %v548 = vtanh.pop %v532
  %v549 = vtanh.pop %v533
  %v550 = vtanh.pop %v534
  %v551 = vtanh.pop %v535
  %v552 = vtanh.pop %v536
  %v553 = vtanh.pop %v537
  %v554 = vtanh.pop %v538
  %v555 = vtanh.pop %v539
  %v556 = vtanh.pop %v540
  %v557 = vtanh.pop %v541
  %v558 = vtanh.pop %v542
  %v559 = vtanh.pop %v543
  %v560 = vtanh.pop %v544
  %v561 = vtanh.pop %v545
  %v562 = vadd.f32 %v546, 1.0
  %v563 = vadd.f32 %v547, 1.0
  %v564 = vadd.f32 %v548, 1.0
  %v565 = vadd.f32 %v549, 1.0
  %v566 = vadd.f32 %v550, 1.0
  %v567 = vadd.f32 %v551, 1.0
  %v568 = vadd.f32 %v552, 1.0
  %v569 = vadd.f32 %v553, 1.0
  %v570 = vadd.f32 %v554, 1.0
  %v571 = vadd.f32 %v555, 1.0
  %v572 = vadd.f32 %v556, 1.0
  %v573 = vadd.f32 %v557, 1.0
  %v574 = vadd.f32 %v558, 1.0
  %v575 = vadd.f32 %v559, 1.0
  %v576 = vadd.f32 %v560, 1.0
  %v577 = vadd.f32 %v561, 1.0
  %v578 = vmul.f32 %v562, 0.5
  %v579 = vmul.f32 %v563, 0.5
  %v580 = vmul.f32 %v564, 0.5
  %v581 = vmul.f32 %v565, 0.5
  %v582 = vmul.f32 %v566, 0.5
  %v583 = vmul.f32 %v567, 0.5
  %v584 = vmul.f32 %v568, 0.5
  %v585 = vmul.f32 %v569, 0.5
  %v586 = vmul.f32 %v570, 0.5
  %v587 = vmul.f32 %v571, 0.5
  %v588 = vmul.f32 %v572, 0.5
  %v589 = vmul.f32 %v573, 0.5
  %v590 = vmul.f32 %v574, 0.5
  %v591 = vmul.f32 %v575, 0.5
  %v592 = vmul.f32 %v576, 0.5
  %v593 = vmul.f32 %v577, 0.5
  %v594 = vmul.f32 %v404, %v578
  %v595 = vmul.f32 %v407, %v579
  %v596 = vmul.f32 %v412, %v580
  %v597 = vmul.f32 %v415, %v581
  %v598 = vmul.f32 %v420, %v582
  %v599 = vmul.f32 %v423, %v583
  %v600 = vmul.f32 %v428, %v584
  %v601 = vmul.f32 %v431, %v585
  %v602 = vmul.f32 %v436, %v586
  %v603 = vmul.f32 %v439, %v587
  %v604 = vmul.f32 %v444, %v588
  %v605 = vmul.f32 %v447, %v589
  %v606 = vmul.f32 %v452, %v590
  %v607 = vmul.f32 %v455, %v591
  %v608 = vmul.f32 %v460, %v592
  %v609 = vmul.f32 %v463, %v593
  %v610 = vpack.c.bf16 %v595, %v594
  %v611 = vpack.c.bf16 %v597, %v596
  %v612 = vpack.c.bf16 %v599, %v598
  %v613 = vpack.c.bf16 %v601, %v600
  %v614 = vpack.c.bf16 %v603, %v602
  %v615 = vpack.c.bf16 %v605, %v604
  %v616 = vpack.c.bf16 %v607, %v606
  %v617 = vpack.c.bf16 %v609, %v608
  %v618 = vld [vmem:[%s5] sm:$0xf]
  %v619 = vld [vmem:[%s5 + $0x4] sm:$0xf]
  %v620 = vld [vmem:[%s5 + $0x8] sm:$0xf]
  %v621 = vld [vmem:[%s5 + $0xc] sm:$0xf]
  %v622 = vld [vmem:[%s5 + $0x10] sm:$0xf]
  %v623 = vld [vmem:[%s5 + $0x14] sm:$0xf]
  %v624 = vld [vmem:[%s5 + $0x18] sm:$0xf]
  %v625 = vld [vmem:[%s5 + $0x1c] sm:$0xf]
  %v626 = vld [vmem:[%s5 + $0x20] sm:$0xf]
  %v627 = vld [vmem:[%s5 + $0x24] sm:$0xf]
  %v628 = vld [vmem:[%s5 + $0x28] sm:$0xf]
  %v629 = vld [vmem:[%s5 + $0x2c] sm:$0xf]
  %v630 = vld [vmem:[%s5 + $0x30] sm:$0xf]
  %v631 = vld [vmem:[%s5 + $0x34] sm:$0xf]
  %v632 = vld [vmem:[%s5 + $0x38] sm:$0xf]
  %v633 = vld [vmem:[%s5 + $0x3c] sm:$0xf]
  %v634 = vld [vmem:[%s6] sm:$0x1]
  %v636 = vlaneseq
  %v637 = vshrl.u32 %v636, 7
  %v638 = vsub.s32 0, %v637
  %v639 = vrot.slane %v634, %v638
  %v657 = vunpack.c.l.b16 %v618
  %v658 = vunpack.c.l.b16 %v619
  %v659 = vunpack.c.l.b16 %v620
  %v660 = vunpack.c.l.b16 %v621
  %v661 = vunpack.c.l.b16 %v622
  %v662 = vunpack.c.l.b16 %v623
  %v663 = vunpack.c.l.b16 %v624
  %v664 = vunpack.c.l.b16 %v625
  %v665 = vunpack.c.l.b16 %v626
  %v666 = vunpack.c.l.b16 %v627
  %v667 = vunpack.c.l.b16 %v628
  %v668 = vunpack.c.l.b16 %v629
  %v669 = vunpack.c.l.b16 %v630
  %v670 = vunpack.c.l.b16 %v631
  %v671 = vunpack.c.l.b16 %v632
  %v672 = vunpack.c.l.b16 %v633
  %v673 = vpack.c.b16 %v658, %v657
  %v674 = vpack.c.b16 %v660, %v659
  %v675 = vpack.c.b16 %v662, %v661
  %v676 = vpack.c.b16 %v664, %v663
  %v677 = vpack.c.b16 %v666, %v665
  %v678 = vpack.c.b16 %v668, %v667
  %v679 = vpack.c.b16 %v670, %v669
  %v680 = vpack.c.b16 %v672, %v671
  %689 = vmatprep.subr.bf16.mxu0 0
  %690 = vmatpush1.bf16.msra.mxu0 %v673
  %691 = vmatprep.subr.bf16.mxu0 0
  %692 = vmatpush1.bf16.msra.mxu0 %v674
  %693 = vmatprep.subr.bf16.mxu0 0
  %694 = vmatpush1.bf16.msra.mxu0 %v675
  %695 = vmatprep.subr.bf16.mxu0 0
  %696 = vmatpush1.bf16.msra.mxu0 %v676
  %697 = vmatprep.subr.bf16.mxu0 0
  %698 = vmatpush1.bf16.msra.mxu0 %v677
  %699 = vmatprep.subr.bf16.mxu0 0
  %700 = vmatpush1.bf16.msra.mxu0 %v678
  %701 = vmatprep.subr.bf16.mxu0 0
  %702 = vmatpush1.bf16.msra.mxu0 %v679
  %703 = vmatprep.subr.bf16.mxu0 0
  %704 = vmatpush1.bf16.msra.mxu0 %v680
  %705 = vmatprep.subr.bf16.mxu0 0
  %706 = vmatpush1.bf16.msra.mxu0 0
  %707 = vmatprep.subr.bf16.mxu0 0
  %708 = vmatpush1.bf16.msra.mxu0 0
  %709 = vmatprep.subr.bf16.mxu0 0
  %710 = vmatpush1.bf16.msra.mxu0 0
  %711 = vmatprep.subr.bf16.mxu0 0
  %712 = vmatpush1.bf16.msra.mxu0 0
  %713 = vmatprep.subr.bf16.mxu0 0
  %714 = vmatpush1.bf16.msra.mxu0 0
  %715 = vmatprep.subr.bf16.mxu0 0
  %716 = vmatpush1.bf16.msra.mxu0 0
  %717 = vmatprep.subr.bf16.mxu0 0
  %718 = vmatpush1.bf16.msra.mxu0 0
  %719 = vmatprep.subr.bf16.mxu0 0
  %720 = vmatpush1.bf16.msra.mxu0 0
  %721 = vmatprep.mubr.bf16.mxu0 0
  %722 = vmatmul.mubr.bf16.gmra.mrb[0].mxu0 %v610
  %v723 = vpop.f32.mrb[0].mxu0
  %v724 = vadd.f32 %v639, %v723
  %v725 = vpop.f32.mrb[0].mxu0
  %v726 = vpop.f32.mrb[0].mxu0
  %v727 = vadd.f32 %v639, %v726
  %v728 = vpop.f32.mrb[0].mxu0
  %729 = vmatprep.mubr.bf16.mxu0 0
  %730 = vmatmul.mubr.bf16.gmra.mrb[0].mxu0 %v611
  %v731 = vpop.f32.mrb[0].mxu0
  %v732 = vadd.f32 %v639, %v731
  %v733 = vpop.f32.mrb[0].mxu0
  %v734 = vpop.f32.mrb[0].mxu0
  %v735 = vadd.f32 %v639, %v734
  %v736 = vpop.f32.mrb[0].mxu0
  %737 = vmatprep.mubr.bf16.mxu0 0
  %738 = vmatmul.mubr.bf16.gmra.mrb[0].mxu0 %v612
  %v739 = vpop.f32.mrb[0].mxu0
  %v740 = vadd.f32 %v639, %v739
  %v741 = vpop.f32.mrb[0].mxu0
  %v742 = vpop.f32.mrb[0].mxu0
  %v743 = vadd.f32 %v639, %v742
  %v744 = vpop.f32.mrb[0].mxu0
  %745 = vmatprep.mubr.bf16.mxu0 0
  %746 = vmatmul.mubr.bf16.gmra.mrb[0].mxu0 %v613
  %v747 = vpop.f32.mrb[0].mxu0
  %v748 = vadd.f32 %v639, %v747
  %v749 = vpop.f32.mrb[0].mxu0
  %v750 = vpop.f32.mrb[0].mxu0
  %v751 = vadd.f32 %v639, %v750
  %v752 = vpop.f32.mrb[0].mxu0
  %753 = vmatprep.mubr.bf16.mxu0 0
  %754 = vmatmul.mubr.bf16.gmra.mrb[0].mxu0 %v614
  %v755 = vpop.f32.mrb[0].mxu0
  %v756 = vadd.f32 %v639, %v755
  %v757 = vpop.f32.mrb[0].mxu0
  %v758 = vpop.f32.mrb[0].mxu0
  %v759 = vadd.f32 %v639, %v758
  %v760 = vpop.f32.mrb[0].mxu0
  %761 = vmatprep.mubr.bf16.mxu0 0
  %762 = vmatmul.mubr.bf16.gmra.mrb[0].mxu0 %v615
  %v763 = vpop.f32.mrb[0].mxu0
  %v764 = vadd.f32 %v639, %v763
  %v765 = vpop.f32.mrb[0].mxu0
  %v766 = vpop.f32.mrb[0].mxu0
  %v767 = vadd.f32 %v639, %v766
  %v768 = vpop.f32.mrb[0].mxu0
  %769 = vmatprep.mubr.bf16.mxu0 0
  %770 = vmatmul.mubr.bf16.gmra.mrb[0].mxu0 %v616
  %v771 = vpop.f32.mrb[0].mxu0
  %v772 = vadd.f32 %v639, %v771
  %v773 = vpop.f32.mrb[0].mxu0
  %v774 = vpop.f32.mrb[0].mxu0
  %v775 = vadd.f32 %v639, %v774
  %v776 = vpop.f32.mrb[0].mxu0
  %777 = vmatprep.mubr.bf16.mxu0 0
  %778 = vmatmul.mubr.bf16.gmra.mrb[0].mxu0 %v617
  %v779 = vpop.f32.mrb[0].mxu0
  %v780 = vadd.f32 %v639, %v779
  %v781 = vpop.f32.mrb[0].mxu0
  %v782 = vpop.f32.mrb[0].mxu0
  %v783 = vadd.f32 %v639, %v782
  %v784 = vpop.f32.mrb[0].mxu0
  %785 = vdwg.mxu0
  %786 = vst.msk [vmem:[%s7] sm:$0xff] %vm344, %v724
  %787 = vst.msk [vmem:[%s7 + $0x8] sm:$0xff] %vm344, %v727
  %788 = vst.msk [vmem:[%s7 + $0x10] sm:$0xff] %vm344, %v732
  %789 = vst.msk [vmem:[%s7 + $0x18] sm:$0xff] %vm344, %v735
  %790 = vst.msk [vmem:[%s7 + $0x20] sm:$0xff] %vm344, %v740
  %791 = vst.msk [vmem:[%s7 + $0x28] sm:$0xff] %vm344, %v743
  %792 = vst.msk [vmem:[%s7 + $0x30] sm:$0xff] %vm344, %v748
  %793 = vst.msk [vmem:[%s7 + $0x38] sm:$0xff] %vm344, %v751
  %794 = vst.msk [vmem:[%s7 + $0x40] sm:$0xff] %vm344, %v756
  %795 = vst.msk [vmem:[%s7 + $0x48] sm:$0xff] %vm344, %v759
  %796 = vst.msk [vmem:[%s7 + $0x50] sm:$0xff] %vm344, %v764
  %797 = vst.msk [vmem:[%s7 + $0x58] sm:$0xff] %vm344, %v767
  %798 = vst.msk [vmem:[%s7 + $0x60] sm:$0xff] %vm344, %v772
  %799 = vst.msk [vmem:[%s7 + $0x68] sm:$0xff] %vm344, %v775
  %800 = vst.msk [vmem:[%s7 + $0x70] sm:$0xff] %vm344, %v780
  %801 = vst.msk [vmem:[%s7 + $0x78] sm:$0xff] %vm344, %v783
  // Predicated region
  $region30: #{cls_encoder_mlp.1} parent=0 // pred_check
    _
  $region31: #{cls_encoder_mlp.1} parent=0 // pred_check_branch
    %803 = sbr.rel (0) target = $region33
  $region32: #{cls_encoder_mlp.1} parent=0 // pred_region
    _
  $region33: #{cls_encoder_mlp.1} parent=0 // pred_fallthru
    _
  // Predicated region
  $region34: #{cls_encoder_mlp.1} parent=0 // pred_check
    _
  $region35: #{cls_encoder_mlp.1} parent=0 // pred_check_branch
    %805 = sbr.rel (0) target = $region37
  $region36: #{cls_encoder_mlp.1} parent=0 // pred_region
    _
  $region37: #{cls_encoder_mlp.1} parent=0 // pred_fallthru
    _

</llo_original>
